<compile_context>
chip_gen: v7x
topology: tpu7x:2x2x1
jax: 0.10.0
libtpu: 0.0.40
codegen_flags: <defaults>
</compile_context>

<pallas_src>
import functools

import numpy as np
import jax
import jax.numpy as jnp
from jax.experimental import pallas as pl
from jax.experimental.pallas import tpu as pltpu


# -----------------------------------------------------------------------------
# Helpers
# -----------------------------------------------------------------------------
def _round_up(x, m):
    return ((x + m - 1) // m) * m


def _vmem_capacity_bytes():
    """Physical VMEM of the local TPU generation (fallback: v7x 64 MiB)."""
    try:
        cap = int(pltpu.get_tpu_info().vmem_capacity_bytes)
        if cap > 0:
            return cap
    except Exception:
        pass
    return 64 * 1024 * 1024


def pick_tiles(K, N, M_pad, w_bytes=1):
    """Choose (tk, tn, K_pad, N_pad, vmem_cap) for the fused BP matmul.

    The weight stream gets ~60% of physical VMEM for its TWO (default double
    buffering) streamed tiles.  tn is lane-dense (multiple of 128); when N
    allows it there is an EVEN number (>=2) of N tiles so the "parallel" axis
    splits evenly across the two TensorCores of a v7x chip.  If the full-K
    weight tile fits the budget, tk == K_pad so the kernel runs one K step.
    """
    vmem_cap = _vmem_capacity_bytes()
    K128 = _round_up(K, 128)
    N128 = _round_up(N, 128)
    # resident sinogram (bf16, assume the pipeline keeps 2 copies) is deducted
    x_bytes = 2 * M_pad * K128 * 2
    budget = max(int(vmem_cap * 0.6) - x_bytes, 2 * 128 * 128 * w_bytes)

    # tk: one K step per N tile when the full-K weight tile fits at tn=128.
    if 2 * K128 * 128 * w_bytes <= budget:
        tk = K128
    else:
        tk = 512
    K_pad = _round_up(K, tk)

    # tn: largest lane-dense width whose 2 streamed buffers fit the budget.
    tn_max = max(128, (budget // (2 * tk * w_bytes)) // 128 * 128)
    if N128 <= 128:
        tn, n_tiles = 128, 1
    else:
        n_tiles = max(2, -(-N128 // tn_max))
        if n_tiles % 2:                      # even tile count (v7x megacore)
            n_tiles += 1
        tn = _round_up(-(-N128 // n_tiles), 128)
        while 2 * tk * tn * w_bytes > budget and tn > 128:
            n_tiles += 2
            tn = _round_up(-(-N128 // n_tiles), 128)
    N_pad = tn * n_tiles
    return tk, tn, K_pad, N_pad, vmem_cap


def compute_vmem_limit(M_pad, K_pad, tk, tn, vmem_cap):
    """Scoped-VMEM limit derived from the actual buffers this kernel uses."""
    use = (2 * M_pad * K_pad * 2        # resident bf16 sinogram (2 buffers)
           + 2 * tk * tn * 1            # 2 streamed int8 weight tiles
           + 2 * M_pad * tn * 4         # output tiles (fp32)
           + M_pad * tn * 4             # fp32 accumulator scratch
           + 2 * tn * 4)                # per-column scale tiles
    limit = max(use + (8 << 20), 32 << 20)   # headroom for compiler scratch
    return int(min(limit, int(vmem_cap * 0.9)))


# -----------------------------------------------------------------------------
# Pallas kernels
# -----------------------------------------------------------------------------
def _fused_bp_kernel_1d(x_ref, w_ref, scale_ref, o_ref):
    """Single K step per N tile: no accumulator, no init/finalize branches."""
    w = w_ref[...].astype(jnp.bfloat16)            # int8 -> bf16 dequant (VPU)
    acc = jnp.dot(x_ref[...], w, preferred_element_type=jnp.float32)
    o_ref[...] = acc * scale_ref[...]              # per-column scale epilogue


def _fused_bp_kernel_2d(x_ref, w_ref, scale_ref, o_ref, acc_ref, *, tk):
    """K-tiled reduction with a resident sinogram block and fp32 accumulator."""
    k = pl.program_id(1)

    @pl.when(k == 0)
    def _init():
        acc_ref[...] = jnp.zeros_like(acc_ref)

    start = pl.multiple_of(k * tk, tk)
    x_blk = x_ref[:, pl.ds(start, tk)]             # slice resident sinogram
    w = w_ref[...].astype(jnp.bfloat16)            # int8 -> bf16 dequant (VPU)
    acc_ref[...] += jnp.dot(x_blk, w, preferred_element_type=jnp.float32)

    @pl.when(k == pl.num_programs(1) - 1)
    def _store():
        o_ref[...] = acc_ref[...] * scale_ref[...]


def fused_bp_matmul(x, w_q, scales, *, tk, tn, vmem_limit_bytes):
    """x: (M, K) bf16 sinogram rows, w_q: (K, N) int8 fused filter+BP matrix,
    scales: (1, N) f32 per-column dequantization scales."""
    M, K = x.shape
    K2, N = w_q.shape
    assert K == K2 and M % 8 == 0 and K % tk == 0 and N % tn == 0

    cost = pl.CostEstimate(
        flops=2 * M * K * N,
        transcendentals=0,
        bytes_accessed=(x.size * x.dtype.itemsize      # sinogram streamed once
                        + w_q.size * 1                  # int8 weights
                        + scales.size * 4
                        + M * N * 4),                   # fp32 output
    )

    if tk == K:
        # 1-D grid over N only: whole-K weight tile, no reduction axis.
        return pl.pallas_call(
            _fused_bp_kernel_1d,
            out_shape=jax.ShapeDtypeStruct((M, N), jnp.float32),
            grid_spec=pltpu.PrefetchScalarGridSpec(
                num_scalar_prefetch=0,
                grid=(N // tn,),
                in_specs=[
                    pl.BlockSpec((M, K), lambda j: (0, 0)),    # resident sinogram
                    pl.BlockSpec((K, tn), lambda j: (0, j)),   # streamed int8 W
                    pl.BlockSpec((1, tn), lambda j: (0, j)),   # per-column scales
                ],
                out_specs=pl.BlockSpec((M, tn), lambda j: (0, j)),
            ),
            compiler_params=pltpu.CompilerParams(
                dimension_semantics=("parallel",),
                vmem_limit_bytes=vmem_limit_bytes),
            cost_estimate=cost,
        )(x, w_q, scales)

    # 2-D grid: N parallel first, K reduction last (accumulator resident).
    kernel = functools.partial(_fused_bp_kernel_2d, tk=tk)
    return pl.pallas_call(
        kernel,
        out_shape=jax.ShapeDtypeStruct((M, N), jnp.float32),
        grid_spec=pltpu.PrefetchScalarGridSpec(
            num_scalar_prefetch=0,
            grid=(N // tn, K // tk),
            in_specs=[
                pl.BlockSpec((M, K), lambda j, k: (0, 0)),     # DMA'd once
                pl.BlockSpec((tk, tn), lambda j, k: (k, j)),   # default 2-buffer
                pl.BlockSpec((1, tn), lambda j, k: (0, j)),
            ],
            out_specs=pl.BlockSpec((M, tn), lambda j, k: (0, j)),
            scratch_shapes=[pltpu.VMEM((M, tn), jnp.float32)],
        ),
        compiler_params=pltpu.CompilerParams(
            dimension_semantics=("parallel", "arbitrary"),
            vmem_limit_bytes=vmem_limit_bytes),
        cost_estimate=cost,
    )(x, w_q, scales)


# -----------------------------------------------------------------------------
# Deterministic parameter / geometry setup (plain numpy glue)
# -----------------------------------------------------------------------------
def make_filter_matrix(num_det, filter_type="Hann", frequency_scaling=1.0,
                       det_spacing=1.0):
    """Dense matrix equivalent of ODL's fbp_filter_op along the detector axis."""
    pad = 2 * int(2 ** np.ceil(np.log2(max(num_det, 2))))
    freqs = np.fft.rfftfreq(pad, d=det_spacing)
    f_nyq = 0.5 / det_spacing
    cutoff = frequency_scaling * f_nyq
    ramp = np.abs(freqs)
    if filter_type == "Hann":
        window = 0.5 * (1.0 + np.cos(np.pi * freqs / cutoff))
    else:  # 'Ram-Lak'
        window = np.ones_like(freqs)
    window = np.where(freqs <= cutoff, window, 0.0)
    response = ramp * window
    h = np.fft.irfft(response, n=pad)           # real-space filter kernel
    idx = (np.arange(num_det)[:, None] - np.arange(num_det)[None, :]) % pad
    filt_mat = h[idx] * det_spacing             # filtered_row = filt_mat @ sino_row
    return filt_mat.astype(np.float32)


def make_bp_matrix(h_img, w_img, num_angles, num_det, det_spacing=1.0):
    """Dense back-projection (adjoint parallel-beam ray transform) matrix.

    Row index = flattened image pixel (row-major); column index = flattened
    (angle, detector) sinogram entry.
    """
    angles = np.arange(num_angles) * np.pi / num_angles
    ys = np.arange(h_img) - (h_img - 1) / 2.0
    xs = np.arange(w_img) - (w_img - 1) / 2.0
    Y, X = np.meshgrid(ys, xs, indexing="ij")
    npix = h_img * w_img
    bp = np.zeros((npix, num_angles, num_det), dtype=np.float64)
    pix_rows = np.arange(npix)
    for a, th in enumerate(angles):
        t = X * np.cos(th) + Y * np.sin(th)
        u = t / det_spacing + (num_det - 1) / 2.0
        d0 = np.floor(u).astype(np.int64)
        w = u - d0
        for dd, ww in ((d0, 1.0 - w), (d0 + 1, w)):     # linear interpolation
            valid = (dd >= 0) & (dd < num_det)
            rows = pix_rows[valid.ravel()]
            cols = dd.ravel()[valid.ravel()]
            vals = ww.ravel()[valid.ravel()]
            np.add.at(bp, (rows, np.full_like(rows, a), cols), vals)
    bp *= np.pi / num_angles                            # angular quadrature weight
    return bp.reshape(npix, num_angles * num_det).astype(np.float32)


def make_fused_fbp_matrix(h_img, w_img, num_angles, num_det,
                          filter_type="Hann", frequency_scaling=1.0):
    """Fold the detector filter into the BP matrix: fused (K, N) float32 with
    fused[(a,d), p] = sum_{e} filt[e, d] * bp[p, (a, e)]."""
    filt = make_filter_matrix(num_det, filter_type, frequency_scaling)
    bp = make_bp_matrix(h_img, w_img, num_angles, num_det)
    bp3 = bp.reshape(h_img * w_img, num_angles, num_det)     # [p, a, e]
    fused = np.einsum("ed,pae->adp", filt, bp3)               # [a, d, p]
    K = num_angles * num_det
    N = h_img * w_img
    return fused.reshape(K, N).astype(np.float32)


def quantize_weights_int8(w, K_pad, N_pad):
    """Pad to (K_pad, N_pad) and quantize to int8 with per-column scales."""
    K, N = w.shape
    w_pad = np.zeros((K_pad, N_pad), dtype=np.float32)
    w_pad[:K, :N] = w
    amax = np.abs(w_pad).max(axis=0)
    scale = np.where(amax > 0.0, amax / 127.0, 1.0).astype(np.float32)
    q = np.clip(np.rint(w_pad / scale[None, :]), -127, 127).astype(np.int8)
    return q, scale.reshape(1, N_pad)


# -----------------------------------------------------------------------------
# FBP forward pass: one fused (filter + back-projection) GEMM in Pallas
# -----------------------------------------------------------------------------
def fbp_forward(x, w_q, scales, h_img, w_img, *, tk, tn, vmem_limit_bytes):
    """x: [B, C, A, D] sinogram -> [B, C, h_img, w_img] reconstruction."""
    B, C, A, D = x.shape
    M, K = B * C, A * D
    K_pad, N_pad = w_q.shape
    M_pad = _round_up(max(M, 16), 16)        # 16 rows: full bf16 sublane packing
    sino = x.reshape(M, K)
    sino_p = jnp.pad(sino, ((0, M_pad - M), (0, K_pad - K))).astype(jnp.bfloat16)
    img = fused_bp_matmul(sino_p, w_q, scales, tk=tk, tn=tn,
                          vmem_limit_bytes=vmem_limit_bytes)
    return img[:M, :h_img * w_img].reshape(B, C, h_img, w_img)


if __name__ == "__main__":
    # small shapes consistent with the module: sinogram [B, 1, angles, det]
    B, C = 2, 1
    NUM_ANGLES, NUM_DET = 8, 16
    H_IMG, W_IMG = 16, 16

    key = jax.random.PRNGKey(0)
    x = jax.random.normal(key, (B, C, NUM_ANGLES, NUM_DET), dtype=jnp.float32)

    M = B * C
    M_pad = _round_up(max(M, 16), 16)
    K = NUM_ANGLES * NUM_DET
    N = H_IMG * W_IMG

    tk, tn, K_pad, N_pad, vmem_cap = pick_tiles(K, N, M_pad)
    vmem_limit = compute_vmem_limit(M_pad, K_pad, tk, tn, vmem_cap)

    fused = make_fused_fbp_matrix(H_IMG, W_IMG, NUM_ANGLES, NUM_DET,
                                  filter_type="Hann", frequency_scaling=1.0)
    w_q_np, scale_np = quantize_weights_int8(fused, K_pad, N_pad)
    w_q = jnp.asarray(w_q_np)                # int8 fused filter+BP weights
    scales = jnp.asarray(scale_np)           # per-column dequant scales (f32)

    run = jax.jit(lambda s: fbp_forward(s, w_q, scales, H_IMG, W_IMG,
                                        tk=tk, tn=tn,
                                        vmem_limit_bytes=vmem_limit))
    out = jax.block_until_ready(run(x))
    assert out.shape == (B, C, H_IMG, W_IMG)

    # check 1: identical quantized math in plain JAX (kernel plumbing).
    sino_b = x.reshape(M, K).astype(jnp.bfloat16)
    w_deq = jnp.asarray(w_q_np[:K, :N]).astype(jnp.bfloat16)
    ref_q = (jnp.dot(sino_b, w_deq, preferred_element_type=jnp.float32)
             * jnp.asarray(scale_np[:, :N])).reshape(B, C, H_IMG, W_IMG)
    np.testing.assert_allclose(np.asarray(out), np.asarray(ref_q),
                               rtol=1e-3, atol=1e-2)

    # check 2: fidelity to the original two-stage fp32 path (filter -> BP);
    # tolerance covers int8 per-column weight quant + bf16 activations.
    filt_mat = make_filter_matrix(NUM_DET, "Hann", 1.0)
    bp_mat = make_bp_matrix(H_IMG, W_IMG, NUM_ANGLES, NUM_DET)
    filt_ref = x.reshape(B * C * NUM_ANGLES, NUM_DET) @ jnp.asarray(filt_mat.T)
    ref32 = (filt_ref.reshape(M, K) @ jnp.asarray(bp_mat.T)).reshape(
        B, C, H_IMG, W_IMG)
    tol = 5e-2 * float(jnp.max(jnp.abs(ref32)))
    np.testing.assert_allclose(np.asarray(out), np.asarray(ref32),
                               rtol=0.0, atol=tol)

    print("KERNEL_OK")
</pallas_src>

<mosaic_0001>
module attributes {stable_mosaic.version = 11 : i64} {
  func.func @_fused_bp_kernel_1d(%arg0: i32, %arg1: memref<16x128xbf16, #tpu.memory_space<vmem>>, %arg2: memref<128x128xi8, #tpu.memory_space<vmem>>, %arg3: memref<1x128xf32, #tpu.memory_space<vmem>>, %arg4: memref<16x128xf32, #tpu.memory_space<vmem>>) attributes {dimension_semantics = [#tpu.dimension_semantics<parallel>], iteration_bounds = array<i64: 2>, scalar_prefetch = 0 : i64, scratch_operands = 0 : i64, tpu.core_type = #tpu.core_type<tc>, window_params = [{pipeline_mode = #tpu.pipeline_mode<synchronous>, transform_indices = @transform_0, window_bounds = array<i64: 16, 128>}, {transform_indices = @transform_1, window_bounds = array<i64: 128, 128>}, {transform_indices = @transform_2, window_bounds = array<i64: 1, 128>}, {transform_indices = @transform_3, window_bounds = array<i64: 16, 128>}]} {
    %c0 = arith.constant 0 : index
    %c0_0 = arith.constant 0 : index
    %0 = vector.load %arg2[%c0, %c0_0] : memref<128x128xi8, #tpu.memory_space<vmem>>, vector<128x128xi8>
    %1 = arith.sitofp %0 : vector<128x128xi8> to vector<128x128xbf16>
    %c0_1 = arith.constant 0 : index
    %c0_2 = arith.constant 0 : index
    %2 = vector.load %arg1[%c0_1, %c0_2] : memref<16x128xbf16, #tpu.memory_space<vmem>>, vector<16x128xbf16>
    %cst = arith.constant dense<0.000000e+00> : vector<16x128xf32>
    %3 = tpu.matmul %2, %1, %cst {dimension_numbers = #tpu.dot_dimension_numbers<[1], [0], [0], [1], [0, 0, 1, 1], [], []>} : vector<16x128xbf16>, vector<128x128xbf16>, vector<16x128xf32> -> vector<16x128xf32>
    %c0_3 = arith.constant 0 : index
    %c0_4 = arith.constant 0 : index
    %4 = vector.load %arg3[%c0_3, %c0_4] : memref<1x128xf32, #tpu.memory_space<vmem>>, vector<1x128xf32>
    %5 = vector.broadcast %4 : vector<1x128xf32> to vector<16x128xf32>
    %6 = arith.mulf %3, %5 : vector<16x128xf32>
    %c0_5 = arith.constant 0 : index
    %c0_6 = arith.constant 0 : index
    %7 = vector.load %arg4[%c0_5, %c0_6] : memref<16x128xf32, #tpu.memory_space<vmem>>, vector<16x128xf32>
    tpu.vector_store %arg4[%c0_5, %c0_6], %6 {strides = array<i32>} : memref<16x128xf32, #tpu.memory_space<vmem>>, vector<16x128xf32>,
    return
  }
  func.func @transform_0(%arg0: i32) -> (i32, i32) {
    %c0_i32 = arith.constant 0 : i32
    %c0_i32_0 = arith.constant 0 : i32
    %c0_i32_1 = arith.constant 0 : i32
    return %c0_i32, %c0_i32_0 : i32, i32
  }
  func.func @transform_1(%arg0: i32) -> (i32, i32) {
    %c0_i32 = arith.constant 0 : i32
    %c0_i32_0 = arith.constant 0 : i32
    return %c0_i32, %arg0 : i32, i32
  }
  func.func @transform_2(%arg0: i32) -> (i32, i32) {
    %c0_i32 = arith.constant 0 : i32
    %c0_i32_0 = arith.constant 0 : i32
    return %c0_i32, %arg0 : i32, i32
  }
  func.func @transform_3(%arg0: i32) -> (i32, i32) {
    %c0_i32 = arith.constant 0 : i32
    %c0_i32_0 = arith.constant 0 : i32
    return %c0_i32, %arg0 : i32, i32
  }
}

</mosaic_0001>

<llo_original>
// kernel: _lambda_.1
$region0: #{_lambda_.1}
  #allocation0 [shape = 'u32[]', space=smem, size = 0x4, offset = 0x4, fixed_abs, tag = 'smem constant byte address 0x4 - core index']
  #allocation1 [shape = 'u32[144,128]{1,0:T(1,128)}', space=vmem, size = 0x12000, scoped, tag = 'internal scratch']
  %s0 = inlined_call_operand.vmem [shape: bf16[16,128], index: 0, kind: input, shape index: {}]
  %s1 = inlined_call_operand.hbm [shape: s8[128,256], index: 1, kind: input, shape index: {}]
  %s2 = inlined_call_operand.vmem [shape: f32[1,256], index: 2, kind: input, shape index: {}]
  %s3 = inlined_call_operand.vmem [shape: f32[16,256], index: 3, kind: output, shape index: {}]
  %s4 = sld [smem:[#allocation0]]
  $region83: #{_lambda_.1} parent=0
    _
  %s6 = ssub.s32 1, %s4
  %s7 = scalar_select 0, %s6, %s4
  $region1: #{_lambda_.1} parent=0
    #allocation2 [shape = 'u8[32768]{0}', space=vmem, size = 0x8000, scoped, tag = 'input window, operand 1']
    #allocation3 [shape = 's32[2]{0}', space=sflag, size = 0x8, scoped, tag = 'scoped memory for _lambda_.1']
    #allocation4 [shape = 'u8[16384]{0}', space=vmem, size = 0x4000, scoped, tag = 'output window, operand 0']
    %8 = vsyncpa [#allocation3], 0
    %s9 = scalar_lea.sflag [#allocation3], 1
    %10 = vsyncpa %s9, 0
    loop: start=0, step=1, limit=4
    $region2: #{_lambda_.1} parent=1 // loop_pre_header
      _
    $region3: #{_lambda_.1} parent=1 // loop_header
      %s12 = sphi 0, %s16
      %p13 = scmp.ge.s32.totalorder %s12, 4
      %s20 = sphi 0, %s20
      %s22 = sphi 0, %s20
      %s23 = sphi 0, %s22
      %s37 = sphi 0, %s23
      %s43 = sphi 0, %s45
      %s46 = sphi 0, %s43
      %s47 = sphi 0, %s46
      %s63 = sphi 0, %s47
      %s69 = sphi 0, %s71
      %s72 = sphi 0, %s69
      %s73 = sphi 0, %s72
      %s89 = sphi 0, %s73
      %s95 = sphi 0, %s97
      %s98 = sphi 0, %s95
      %s99 = sphi 0, %s98
      %s115 = sphi 0, %s99
    $region4: #{_lambda_.1} parent=1 // loop_header_branch
      %15 = sbr.rel (%p13) target = $region8
    $region5: #{_lambda_.1} parent=1 // loop_body
      %s17 = ssub.s32 %s12, 1
      %s18 = ssub.s32 %s12, 2
      %s19 = sadd.s32 %s12, 1
      %s21 = sadd.s32 %s20, 1
      %p24 = scmp.eq.s32.totalorder %s12, 1
      %p25 = scmp.ne.s32.totalorder %s20, %s22
      %p26 = scmp.eq.s32.totalorder %s12, 0
      %p27 = por %p25, %p26
      %p28 = scmp.ne.s32.totalorder %s20, %s22
      %p29 = scmp.eq.s32.totalorder %s17, 1
      %p30 = por %p28, %p29
      %p31 = scmp.ne.s32.totalorder %s22, %s23
      %p32 = scmp.eq.s32.totalorder %s17, 0
      %p33 = por %p31, %p32
      %p34 = scmp.ne.s32.totalorder %s22, %s23
      %p35 = scmp.eq.s32.totalorder %s18, 1
      %p36 = por %p34, %p35
      %p38 = scmp.ne.s32.totalorder %s23, %s37
      %p39 = scmp.eq.s32.totalorder %s18, 0
      %p40 = por %p38, %p39
      %s41 = ssub.s32 %s12, %s19
      %p42 = scmp.eq.s32.totalorder %s41, 0
      %s44 = sadd.s32 %s43, 1
      %s45 = scalar_select %p42, %s43, %s44
      %p48 = pneg %p42
      %p49 = scmp.eq.s32.totalorder %s12, 1
      %p50 = por %p48, %p49
      %p51 = scmp.ne.s32.totalorder %s43, %s46
      %p52 = scmp.eq.s32.totalorder %s12, 0
      %p53 = por %p51, %p52
      %p54 = scmp.ne.s32.totalorder %s43, %s46
      %p55 = scmp.eq.s32.totalorder %s17, 1
      %p56 = por %p54, %p55
      %p57 = scmp.ne.s32.totalorder %s46, %s47
      %p58 = scmp.eq.s32.totalorder %s17, 0
      %p59 = por %p57, %p58
      %p60 = scmp.ne.s32.totalorder %s46, %s47
      %p61 = scmp.eq.s32.totalorder %s18, 1
      %p62 = por %p60, %p61
      %p64 = scmp.ne.s32.totalorder %s47, %s63
      %p65 = scmp.eq.s32.totalorder %s18, 0
      %p66 = por %p64, %p65
      %s67 = ssub.s32 %s12, %s19
      %p68 = scmp.eq.s32.totalorder %s67, 0
      %s70 = sadd.s32 %s69, 1
      %s71 = scalar_select %p68, %s69, %s70
      %p74 = pneg %p68
      %p75 = scmp.eq.s32.totalorder %s12, 1
      %p76 = por %p74, %p75
      %p77 = scmp.ne.s32.totalorder %s69, %s72
      %p78 = scmp.eq.s32.totalorder %s12, 0
      %p79 = por %p77, %p78
      %p80 = scmp.ne.s32.totalorder %s69, %s72
      %p81 = scmp.eq.s32.totalorder %s17, 1
      %p82 = por %p80, %p81
      %p83 = scmp.ne.s32.totalorder %s72, %s73
      %p84 = scmp.eq.s32.totalorder %s17, 0
      %p85 = por %p83, %p84
      %p86 = scmp.ne.s32.totalorder %s72, %s73
      %p87 = scmp.eq.s32.totalorder %s18, 1
      %p88 = por %p86, %p87
      %p90 = scmp.ne.s32.totalorder %s73, %s89
      %p91 = scmp.eq.s32.totalorder %s18, 0
      %p92 = por %p90, %p91
      %s93 = ssub.s32 %s12, %s19
      %p94 = scmp.eq.s32.totalorder %s93, 0
      %s96 = sadd.s32 %s95, 1
      %s97 = scalar_select %p94, %s95, %s96
      %p100 = pneg %p94
      %p101 = scmp.eq.s32.totalorder %s12, 1
      %p102 = por %p100, %p101
      %p103 = scmp.ne.s32.totalorder %s95, %s98
      %p104 = scmp.eq.s32.totalorder %s12, 0
      %p105 = por %p103, %p104
      %p106 = scmp.ne.s32.totalorder %s95, %s98
      %p107 = scmp.eq.s32.totalorder %s17, 1
      %p108 = por %p106, %p107
      %p109 = scmp.ne.s32.totalorder %s98, %s99
      %p110 = scmp.eq.s32.totalorder %s17, 0
      %p111 = por %p109, %p110
      %p112 = scmp.ne.s32.totalorder %s98, %s99
      %p113 = scmp.eq.s32.totalorder %s18, 1
      %p114 = por %p112, %p113
      %p116 = scmp.ne.s32.totalorder %s99, %s115
      %p117 = scmp.eq.s32.totalorder %s18, 0
      %p118 = por %p116, %p117
      %p119 = scmp.le.s32.totalorder 1, %s12
      %p120 = scmp.lt.s32.totalorder %s12, 3
      %p121 = pnand %p119, %p120
      %p122 = pneg %p121
      // Predicated region
      $region9: #{_lambda_.1} parent=5 // pred_check
        _
      $region10: #{_lambda_.1} parent=5 // pred_check_branch
        %124 = sbr.rel (%p121) target = $region12
      $region11: #{_lambda_.1} parent=5 // pred_region
        %s125 = ssub.s32 %s12, 1
        // Predicated region
        $region13: #{_lambda_.1} parent=11 // pred_check
          %p126 = pneg %p33
        $region14: #{_lambda_.1} parent=11 // pred_check_branch
          %128 = sbr.rel (%p126) target = $region16
        $region15: #{_lambda_.1} parent=11 // pred_region
          _
        $region16: #{_lambda_.1} parent=11 // pred_fallthru
          _
      $region12: #{_lambda_.1} parent=5 // pred_fallthru
        _
      %p129 = scmp.lt.s32.totalorder %s12, 2
      // Predicated region
      $region17: #{_lambda_.1} parent=5 // pred_check
        %p130 = pneg %p129
      $region18: #{_lambda_.1} parent=5 // pred_check_branch
        %132 = sbr.rel (%p130) target = $region20
      $region19: #{_lambda_.1} parent=5 // pred_region
        // Predicated region
        $region21: #{_lambda_.1} parent=19 // pred_check
          %p133 = pneg %p53
        $region22: #{_lambda_.1} parent=19 // pred_check_branch
          %135 = sbr.rel (%p133) target = $region24
        $region23: #{_lambda_.1} parent=19 // pred_region
          %s136 = sand.u32 %s43, 1
          %s137 = scalar_lea.sflag [#allocation3], %s136
          %s138 = sand.u32 %s43, 1
          %s139 = smul.addr %s138, 32
          %s140 = scalar_lea.vmem [#allocation2], %s139
          %s142 = ssub.s32 512, 512
          %143 = vsyncadd %s137, %s142
          %s144 = smul.addr %s12, 128
          %s145 = scalar_lea.hbm %s1, %s144
          %s146 = sshll.u32 %s140, 4
          %s147 = int_to_ptr.vmem [resolvable:$true] %s146
          %152 = dma.hbm_to_vmem [thread:$0]  %s145, 512, %s147, %s137, 256, 128, 8
        $region24: #{_lambda_.1} parent=19 // pred_fallthru
          _
        // Predicated region
        $region25: #{_lambda_.1} parent=19 // pred_check
          %p153 = pneg %p79
        $region26: #{_lambda_.1} parent=19 // pred_check_branch
          %155 = sbr.rel (%p153) target = $region28
        $region27: #{_lambda_.1} parent=19 // pred_region
          %p156 = scmp.lt.s32.totalorder %s12, 1
          %s157 = scalar_select %p156, %s12, 1
          %s158 = scalar_lea.vmem %s2, %s157
        $region28: #{_lambda_.1} parent=19 // pred_fallthru
          _
      $region20: #{_lambda_.1} parent=5 // pred_fallthru
        _
      %p159 = scmp.le.s32.totalorder 1, %s12
      %p160 = scmp.lt.s32.totalorder %s12, 3
      %p161 = pnand %p159, %p160
      %p162 = pneg %p161
      // Predicated region
      $region29: #{_lambda_.1} parent=5 // pred_check
        _
      $region30: #{_lambda_.1} parent=5 // pred_check_branch
        %164 = sbr.rel (%p161) target = $region32
      $region31: #{_lambda_.1} parent=5 // pred_region
        %s165 = ssub.s32 %s12, 1
        %s166 = sand.u32 %s46, 1
        %s167 = scalar_lea.sflag [#allocation3], %s166
        %s168 = sand.u32 %s46, 1
        %s169 = smul.addr %s168, 32
        %s170 = scalar_lea.vmem [#allocation2], %s169
        // Predicated region
        $region33: #{_lambda_.1} parent=31 // pred_check
          %p171 = pneg %p59
        $region34: #{_lambda_.1} parent=31 // pred_check_branch
          %173 = sbr.rel (%p171) target = $region36
        $region35: #{_lambda_.1} parent=31 // pred_region
          %174 = dma.done %s167, 512
        $region36: #{_lambda_.1} parent=31 // pred_fallthru
          _
        %p175 = pneg %p33
        %p176 = pneg %p30
        %s177 = sand.u32 %s46, 1
        %s178 = scalar_lea.sflag [#allocation3], %s177
        %s179 = sand.u32 %s46, 1
        %s180 = smul.addr %s179, 32
        %s181 = scalar_lea.vmem [#allocation2], %s180
        %p182 = pneg %p59
        %p183 = pneg %p56
        %p184 = scmp.lt.s32.totalorder %s17, 1
        %s185 = scalar_select %p184, %s17, 1
        %s186 = scalar_lea.vmem %s2, %s185
        %p187 = pneg %p85
        %p188 = pneg %p82
        %p189 = pneg %p111
        %p190 = pneg %p108
        %s191 = sand.u32 %s98, 1
        %s192 = sand.u32 %s98, 1
        %s193 = smul.addr %s192, 16
        %s194 = scalar_lea.vmem [#allocation4], %s193
        %p195 = scmp.lt.s32.totalorder %s17, 1
        %s196 = scalar_select %p195, %s17, 1
        %s197 = scalar_lea.vmem %s2, %s196
        %v199 = vld [vmem:[%s170] sm:$0xff]
        %v200 = vld [vmem:[%s170 + $0x8] sm:$0xff]
        %v201 = vld [vmem:[%s170 + $0x10] sm:$0xff]
        %v202 = vld [vmem:[%s170 + $0x18] sm:$0xff]
        %v203 = vunpack.c.l.s8.bf16 %v199
        %v204 = vunpack.c.h.s8.bf16 %v199
        %v205 = vunpack.c.l.s8.bf16 %v200
        %v206 = vunpack.c.h.s8.bf16 %v200
        %v207 = vunpack.c.l.s8.bf16 %v201
        %v208 = vunpack.c.h.s8.bf16 %v201
        %v209 = vunpack.c.l.s8.bf16 %v202
        %v210 = vunpack.c.h.s8.bf16 %v202
        %v211 = vld [vmem:[%s0] sm:$0xf]
        %v212 = vld [vmem:[%s0 + $0x4] sm:$0xf]
        %v215 = vunpack.c.l.b16 %v211
        %v216 = vunpack.c.l.b16 %v212
        %v217 = vpack.c.b16 %v216, %v215
        %219 = vmatprep.subr.bf16.mxu0 0
        %220 = vmatpush1.bf16.msra.mxu0 %v203
        %221 = vmatprep.subr.bf16.mxu0 0
        %222 = vmatpush1.bf16.msra.mxu0 %v204
        %223 = vmatprep.subr.bf16.mxu0 0
        %224 = vmatpush1.bf16.msra.mxu0 %v205
        %225 = vmatprep.subr.bf16.mxu0 0
        %226 = vmatpush1.bf16.msra.mxu0 %v206
        %227 = vmatprep.subr.bf16.mxu0 0
        %228 = vmatpush1.bf16.msra.mxu0 %v207
        %229 = vmatprep.subr.bf16.mxu0 0
        %230 = vmatpush1.bf16.msra.mxu0 %v208
        %231 = vmatprep.subr.bf16.mxu0 0
        %232 = vmatpush1.bf16.msra.mxu0 %v209
        %233 = vmatprep.subr.bf16.mxu0 0
        %234 = vmatpush1.bf16.msra.mxu0 %v210
        %235 = vmatprep.subr.bf16.mxu0 0
        %236 = vmatpush1.bf16.msra.mxu0 0
        %237 = vmatprep.subr.bf16.mxu0 0
        %238 = vmatpush1.bf16.msra.mxu0 0
        %239 = vmatprep.subr.bf16.mxu0 0
        %240 = vmatpush1.bf16.msra.mxu0 0
        %241 = vmatprep.subr.bf16.mxu0 0
        %242 = vmatpush1.bf16.msra.mxu0 0
        %243 = vmatprep.subr.bf16.mxu0 0
        %244 = vmatpush1.bf16.msra.mxu0 0
        %245 = vmatprep.subr.bf16.mxu0 0
        %246 = vmatpush1.bf16.msra.mxu0 0
        %247 = vmatprep.subr.bf16.mxu0 0
        %248 = vmatpush1.bf16.msra.mxu0 0
        %249 = vmatprep.subr.bf16.mxu0 0
        %250 = vmatpush1.bf16.msra.mxu0 0
        %251 = vmatprep.mubr.bf16.mxu0 0
        %252 = vmatmul.mubr.bf16.gmra.mrb[0].mxu0 %v217
        %v253 = vpop.f32.mrb[0].mxu0
        %v254 = vadd.f32 0.0, %v253
        %v255 = vpop.f32.mrb[0].mxu0
        %v256 = vpop.f32.mrb[0].mxu0
        %v257 = vadd.f32 0.0, %v256
        %v258 = vpop.f32.mrb[0].mxu0
        %259 = vdwg.mxu0
        %v260 = vld [vmem:[%s197] sm:$0x1]
        %v262 = vlaneseq
        %v263 = vshrl.u32 %v262, 7
        %v264 = vsub.s32 0, %v263
        %v265 = vrot.slane %v260, %v264
        %v267 = vmul.f32 %v254, %v265
        %v268 = vmul.f32 %v257, %v265
        %269 = vst [vmem:[%s194] sm:$0xff] %v267
        %270 = vst [vmem:[%s194 + $0x8] sm:$0xff] %v268
        %s271 = sand.u32 %s98, 1
        %s272 = sand.u32 %s98, 1
        %s273 = smul.addr %s272, 16
        %s274 = scalar_lea.vmem [#allocation4], %s273
        // Predicated region
        $region37: #{_lambda_.1} parent=31 // pred_check
          %p275 = pneg %p108
        $region38: #{_lambda_.1} parent=31 // pred_check_branch
          %277 = sbr.rel (%p275) target = $region40
        $region39: #{_lambda_.1} parent=31 // pred_region
          %s278 = smul.addr %s17, 8
          %s279 = scalar_lea.vmem %s3, %s278
          // Predicated region
          $region41: #{_lambda_.1} parent=39 // pred_check
            _
          $region42: #{_lambda_.1} parent=39 // pred_check_branch
            %281 = sbr.rel (0) target = $region44
          $region43: #{_lambda_.1} parent=39 // pred_region
            // Predicated region
            $region45: #{_lambda_.1} parent=43 // pred_check
              _
            $region46: #{_lambda_.1} parent=43 // pred_check_branch
              %283 = sbr.rel (0) target = $region48
            $region47: #{_lambda_.1} parent=43 // pred_region
              // Predicated region
              $region60: #{_lambda_.1} parent=47 // pred_check
                _
              $region61: #{_lambda_.1} parent=47 // pred_check_branch
                %300 = sbr.rel (0) target = $region63
              $region62: #{_lambda_.1} parent=47 // pred_region
                loop: start=0, step=1, limit=1
                $region64: #{_lambda_.1} parent=62 // loop_pre_header
                  _
                $region65: #{_lambda_.1} parent=62 // loop_header
                  %s302 = sphi 0, %s306
                  %p303 = scmp.ge.s32.totalorder %s302, 1
                  %s307 = sphi %s274, %s274
                  %s308 = sphi %s279, %s279
                $region66: #{_lambda_.1} parent=62 // loop_header_branch
                  %305 = sbr.rel (%p303) target = $region70
                $region67: #{_lambda_.1} parent=62 // loop_body
                  %v309 = vld [vmem:[%s307] sm:$0xff]
                  %310 = vst [vmem:[%s308] sm:$0xff] %v309
                  %v311 = vld [vmem:[%s307 + $0x8] sm:$0xff]
                  %312 = vst [vmem:[%s308 + $0x10] sm:$0xff] %v311
                $region68: #{_lambda_.1} parent=62 // loop_footer
                  %s306 = sadd.s32 1, %s302
                $region69: #{_lambda_.1} parent=62 // loop_footer_branch
                  %301 = sbr.rel target = $region65
                $region70: #{_lambda_.1} parent=62 // loop_exit
                  _
              $region63: #{_lambda_.1} parent=47 // pred_fallthru
                _
              // Predicated region
              $region71: #{_lambda_.1} parent=47 // pred_check
                _
              $region72: #{_lambda_.1} parent=47 // pred_check_branch
                %314 = sbr.rel target = $region74
              $region73: #{_lambda_.1} parent=47 // pred_region
                _
              $region74: #{_lambda_.1} parent=47 // pred_fallthru
                _
            $region48: #{_lambda_.1} parent=43 // pred_fallthru
              _
            // Predicated region
            $region49: #{_lambda_.1} parent=43 // pred_check
              _
            $region50: #{_lambda_.1} parent=43 // pred_check_branch
              %285 = sbr.rel target = $region52
            $region51: #{_lambda_.1} parent=43 // pred_region
              loop: start=0, step=1, limit=1
              $region53: #{_lambda_.1} parent=51 // loop_pre_header
                _
              $region54: #{_lambda_.1} parent=51 // loop_header
                %s288 = sphi 0, %s292
                %p289 = scmp.ge.s32.totalorder %s288, 1
                %s293 = sphi %s274, %s274
                %s294 = sphi %s279, %s279
              $region55: #{_lambda_.1} parent=51 // loop_header_branch
                %291 = sbr.rel (%p289) target = $region59
              $region56: #{_lambda_.1} parent=51 // loop_body
                %v295 = vld [vmem:[%s293] sm:$0xff]
                %296 = vst [vmem:[%s294] sm:$0xff] %v295
                %v297 = vld [vmem:[%s293 + $0x8] sm:$0xff]
                %298 = vst [vmem:[%s294 + $0x10] sm:$0xff] %v297
              $region57: #{_lambda_.1} parent=51 // loop_footer
                %s292 = sadd.s32 1, %s288
              $region58: #{_lambda_.1} parent=51 // loop_footer_branch
                %287 = sbr.rel target = $region54
              $region59: #{_lambda_.1} parent=51 // loop_exit
                _
            $region52: #{_lambda_.1} parent=43 // pred_fallthru
              _
          $region44: #{_lambda_.1} parent=39 // pred_fallthru
            _
          %315 = vnop
        $region40: #{_lambda_.1} parent=31 // pred_fallthru
          _
      $region32: #{_lambda_.1} parent=5 // pred_fallthru
        _
      %p316 = scmp.le.s32.totalorder 2, %s12
      // Predicated region
      $region75: #{_lambda_.1} parent=5 // pred_check
        %p317 = pneg %p316
      $region76: #{_lambda_.1} parent=5 // pred_check_branch
        %319 = sbr.rel (%p317) target = $region78
      $region77: #{_lambda_.1} parent=5 // pred_region
        %s320 = ssub.s32 %s12, 2
        // Predicated region
        $region79: #{_lambda_.1} parent=77 // pred_check
          %p321 = pneg %p114
        $region80: #{_lambda_.1} parent=77 // pred_check_branch
          %323 = sbr.rel (%p321) target = $region82
        $region81: #{_lambda_.1} parent=77 // pred_region
          %s324 = sand.u32 %s99, 1
          %s325 = sand.u32 %s99, 1
          %s326 = smul.addr %s325, 16
          %s327 = scalar_lea.vmem [#allocation4], %s326
        $region82: #{_lambda_.1} parent=77 // pred_fallthru
          _
      $region78: #{_lambda_.1} parent=5 // pred_fallthru
        _
    $region6: #{_lambda_.1} parent=1 // loop_footer
      %s16 = sadd.s32 1, %s12
    $region7: #{_lambda_.1} parent=1 // loop_footer_branch
      %11 = sbr.rel target = $region3
    $region8: #{_lambda_.1} parent=1 // loop_exit
      _
    %328 = vsyncpa [#allocation3], 1
    %s329 = scalar_lea.sflag [#allocation3], 1
    %330 = vsyncpa %s329, 1

</llo_original>
